<compile_context>
chip_gen: v7x
topology: tpu7x:2x2x1
jax: 0.10.0
libtpu: 0.0.40
codegen_flags: <defaults>
</compile_context>

<pallas_src>
import functools

import jax
import jax.numpy as jnp
from jax.experimental import pallas as pl
from jax.experimental.pallas import tpu as pltpu


def _round_up(n, m):
    return ((n + m - 1) // m) * m


def _mlp_kernel(n_hidden, P, x_ref, blob_ref, out_ref):
    """One batch tile of the fused MLP.

    x_ref:    (TB, P)    f32 states, zero-padded to P lanes
    blob_ref: (rows, P)  f32 packed parameters (see _pack_params)
    out_ref:  (TB, 1)    f32 V(s) per row
    """
    h = x_ref[...]                                    # (TB, P)
    r = 0
    for _ in range(n_hidden):
        w = blob_ref[r:r + P, :]                      # (P, P)  weight block
        b = blob_ref[r + P:r + P + 1, :]              # (1, P)  bias row
        h = jnp.maximum(
            jnp.dot(h, w, preferred_element_type=jnp.float32) + b, 0.0)
        r += P + 8
    # fc2 (hidden -> 1): VPU multiply + XLU lane reduce instead of N=1 matmul.
    w2 = blob_ref[r:r + 1, :]                         # (1, P)  fc2 weight row
    b2 = blob_ref[r + 1:r + 2, 0:1]                   # (1, 1)  fc2 bias
    out_ref[...] = jnp.sum(h * w2, axis=-1, keepdims=True) + b2


@functools.partial(jax.jit, static_argnums=(2, 3, 4, 5))
def _forward_padded(X, blob, n_hidden, P, TB, state_dim):
    """X: (B, F) f32-castable, F >= state_dim.  Returns (B, 1) f32."""
    B = X.shape[0]
    B_pad = _round_up(B, TB)

    # Semantic slice (x[0:state_dim]) folded into the zero-padded layout.
    x_pad = jnp.zeros((B_pad, P), jnp.float32)
    x_pad = x_pad.at[:B, :state_dim].set(X[:, :state_dim].astype(jnp.float32))

    kernel = functools.partial(_mlp_kernel, n_hidden, P)
    out = pl.pallas_call(
        kernel,
        out_shape=jax.ShapeDtypeStruct((B_pad, 1), jnp.float32),
        grid=(B_pad // TB,),
        in_specs=[
            pl.BlockSpec((TB, P), lambda i: (i, 0)),
            # Parameter blob: same block every step -> stays VMEM resident.
            pl.BlockSpec(blob.shape, lambda i: (0, 0)),
        ],
        out_specs=pl.BlockSpec((TB, 1), lambda i: (i, 0)),
        compiler_params=pltpu.CompilerParams(
            dimension_semantics=("parallel",)),        # batch across v7x TCs
    )(x_pad, blob)
    return out[:B]


class SimpleValueFunctionPallas:
    """JAX/Pallas port of SimpleValueFunction."""

    def __init__(self, state_dim, hidden_dims, key):
        self.state_dim = int(state_dim)
        self.hidden_dims = list(hidden_dims)
        self.n_hidden = len(self.hidden_dims)          # relu'd linear layers
        dims = [self.state_dim] + self.hidden_dims + [1]
        self.n_linear = len(dims) - 1

        # Common padded lane width for every activation / weight block.
        self.P = _round_up(max(dims[:-1]), 128)

        # PyTorch nn.Linear default init: U(-1/sqrt(fan_in), +1/sqrt(fan_in)).
        self.weights = []   # (in_i, out_i)  == torch weight transposed
        self.biases = []    # (out_i,)
        for i in range(self.n_linear):
            key, kw, kb = jax.random.split(key, 3)
            bound = 1.0 / float(dims[i]) ** 0.5
            self.weights.append(jax.random.uniform(
                kw, (dims[i], dims[i + 1]), minval=-bound, maxval=bound,
                dtype=jnp.float32))
            self.biases.append(jax.random.uniform(
                kb, (dims[i + 1],), minval=-bound, maxval=bound,
                dtype=jnp.float32))

        # TODO(synk): on v6e/v7x the blob could be bf16 (f32 MXU accumulate);
        # kept f32 so v5e (no bf16 VPU path) needs no extra casts and results
        # track the f32 PyTorch module.
        self.blob = self._pack_params()

    def _pack_params(self):
        """Pack all layers into one (rows, P) f32 array.

        Layout (all row offsets multiples of 8):
          for each hidden layer i:  P rows holding W_i (zero padded), then
                                    8 rows whose row 0 is bias_i (zero padded)
          then 8 rows for fc2:      row 0 = fc2 weight as a lane row,
                                    row 1 lane 0 = fc2 bias.
        """
        P = self.P
        rows = self.n_hidden * (P + 8) + 8
        blob = jnp.zeros((rows, P), jnp.float32)
        r = 0
        for i in range(self.n_hidden):
            w, b = self.weights[i], self.biases[i]
            blob = blob.at[r:r + w.shape[0], :w.shape[1]].set(w)
            blob = blob.at[r + P, :b.shape[0]].set(b)
            r += P + 8
        w2, b2 = self.weights[-1], self.biases[-1]     # (hid_last, 1), (1,)
        blob = blob.at[r, :w2.shape[0]].set(w2[:, 0])
        blob = blob.at[r + 1, 0].set(b2[0])
        return blob

    def _tile_rows(self, B):
        # Bigger tiles amortize the ~0.35 us per-grid-step overhead; the
        # whole working set (TB*P f32 + blob) stays far below the VMEM limit.
        if B >= 512:
            return 512
        if B >= 128:
            return 128
        return _round_up(B, 8)

    def forward_batch(self, X):
        """X: (B, F) with F >= state_dim.  Returns V(s) with shape (B, 1)."""
        TB = self._tile_rows(X.shape[0])
        return _forward_padded(X, self.blob, self.n_hidden, self.P, TB,
                               self.state_dim)

    def __call__(self, x):
        """x: 1-D state vector (len >= state_dim).  Returns shape (1,)."""
        x = x[0:self.state_dim]                        # matches torch slice
        return self.forward_batch(x[None, :])[0]


def _reference_forward(model, x):
    """Pure-jnp reference with identical semantics (for correctness check)."""
    h = x[0:model.state_dim].astype(jnp.float32)
    for i in range(model.n_hidden):
        h = jnp.maximum(h @ model.weights[i] + model.biases[i], 0.0)
    return h @ model.weights[-1] + model.biases[-1]    # (1,)


if __name__ == "__main__":
    key = jax.random.PRNGKey(0)
    k_x, k_params, k_b = jax.random.split(key, 3)

    state_dim = 32
    hidden_dims = [64, 32]

    model = SimpleValueFunctionPallas(state_dim, hidden_dims, k_params)

    # Single 1-D state, longer than state_dim to exercise the x[0:state_dim]
    # slice (the original PyTorch call pattern).
    x = jax.random.normal(k_x, (40,), dtype=jnp.float32)
    out = jax.block_until_ready(model(x))
    ref = _reference_forward(model, x)
    assert out.shape == (1,), out.shape
    assert jnp.allclose(out, ref, atol=1e-5, rtol=1e-5), (out, ref)

    # Batched path (the perf-relevant usage).
    Xb = jax.random.normal(k_b, (16, state_dim), dtype=jnp.float32)
    ob = jax.block_until_ready(model.forward_batch(Xb))
    refb = jnp.stack([_reference_forward(model, Xb[i]) for i in range(16)])
    assert ob.shape == (16, 1), ob.shape
    assert jnp.allclose(ob, refb, atol=1e-4, rtol=1e-4), (ob, refb)

    print("KERNEL_OK")
</pallas_src>

<mosaic_0001>
module attributes {stable_mosaic.version = 11 : i64} {
  func.func @_mlp_kernel(%arg0: i32, %arg1: memref<8x128xf32, #tpu.memory_space<vmem>>, %arg2: memref<280x128xf32, #tpu.memory_space<vmem>>, %arg3: memref<8x1xf32, #tpu.memory_space<vmem>>) attributes {dimension_semantics = [#tpu.dimension_semantics<parallel>], iteration_bounds = array<i64: 1>, scalar_prefetch = 0 : i64, scratch_operands = 0 : i64, tpu.core_type = #tpu.core_type<tc>, window_params = [{transform_indices = @transform_0, window_bounds = array<i64: 8, 128>}, {pipeline_mode = #tpu.pipeline_mode<synchronous>, transform_indices = @transform_1, window_bounds = array<i64: 280, 128>}, {transform_indices = @transform_2, window_bounds = array<i64: 8, 1>}]} {
    %c0 = arith.constant 0 : index
    %c0_0 = arith.constant 0 : index
    %0 = vector.load %arg1[%c0, %c0_0] : memref<8x128xf32, #tpu.memory_space<vmem>>, vector<8x128xf32>
    %c0_1 = arith.constant 0 : index
    %c0_2 = arith.constant 0 : index
    %1 = vector.load %arg2[%c0_1, %c0_2] : memref<280x128xf32, #tpu.memory_space<vmem>>, vector<128x128xf32>
    %c128 = arith.constant 128 : index
    %c0_3 = arith.constant 0 : index
    %2 = vector.load %arg2[%c128, %c0_3] : memref<280x128xf32, #tpu.memory_space<vmem>>, vector<1x128xf32>
    %cst = arith.constant dense<0.000000e+00> : vector<8x128xf32>
    %3 = tpu.matmul %0, %1, %cst {dimension_numbers = #tpu.dot_dimension_numbers<[1], [0], [0], [1], [0, 0, 1, 1], [], []>} : vector<8x128xf32>, vector<128x128xf32>, vector<8x128xf32> -> vector<8x128xf32>
    %4 = vector.broadcast %2 : vector<1x128xf32> to vector<8x128xf32>
    %5 = arith.addf %3, %4 : vector<8x128xf32>
    %cst_4 = arith.constant 0.000000e+00 : f32
    %6 = vector.broadcast %cst_4 : f32 to vector<8x128xf32>
    %7 = arith.maximumf %5, %6 : vector<8x128xf32>
    %c136 = arith.constant 136 : index
    %c0_5 = arith.constant 0 : index
    %8 = vector.load %arg2[%c136, %c0_5] : memref<280x128xf32, #tpu.memory_space<vmem>>, vector<128x128xf32>
    %c264 = arith.constant 264 : index
    %c0_6 = arith.constant 0 : index
    %9 = vector.load %arg2[%c264, %c0_6] : memref<280x128xf32, #tpu.memory_space<vmem>>, vector<1x128xf32>
    %cst_7 = arith.constant dense<0.000000e+00> : vector<8x128xf32>
    %10 = tpu.matmul %7, %8, %cst_7 {dimension_numbers = #tpu.dot_dimension_numbers<[1], [0], [0], [1], [0, 0, 1, 1], [], []>} : vector<8x128xf32>, vector<128x128xf32>, vector<8x128xf32> -> vector<8x128xf32>
    %11 = vector.broadcast %9 : vector<1x128xf32> to vector<8x128xf32>
    %12 = arith.addf %10, %11 : vector<8x128xf32>
    %cst_8 = arith.constant 0.000000e+00 : f32
    %13 = vector.broadcast %cst_8 : f32 to vector<8x128xf32>
    %14 = arith.maximumf %12, %13 : vector<8x128xf32>
    %c272 = arith.constant 272 : index
    %c0_9 = arith.constant 0 : index
    %15 = vector.load %arg2[%c272, %c0_9] : memref<280x128xf32, #tpu.memory_space<vmem>>, vector<1x128xf32>
    %c273 = arith.constant 273 : index
    %c0_10 = arith.constant 0 : index
    %16 = vector.load %arg2[%c273, %c0_10] : memref<280x128xf32, #tpu.memory_space<vmem>>, vector<1x1xf32>
    %17 = vector.broadcast %15 : vector<1x128xf32> to vector<8x128xf32>
    %18 = arith.mulf %14, %17 : vector<8x128xf32>
    %cst_11 = arith.constant dense<0.000000e+00> : vector<8xf32>
    %19 = vector.multi_reduction <add>, %18, %cst_11 [1] : vector<8x128xf32> to vector<8xf32>
    %20 = vector.shape_cast %19 : vector<8xf32> to vector<8x1xf32>
    %21 = vector.broadcast %16 : vector<1x1xf32> to vector<8x1xf32>
    %22 = arith.addf %20, %21 : vector<8x1xf32>
    %c0_12 = arith.constant 0 : index
    %c0_13 = arith.constant 0 : index
    %23 = vector.load %arg3[%c0_12, %c0_13] : memref<8x1xf32, #tpu.memory_space<vmem>>, vector<8x1xf32>
    tpu.vector_store %arg3[%c0_12, %c0_13], %22 {strides = array<i32>} : memref<8x1xf32, #tpu.memory_space<vmem>>, vector<8x1xf32>,
    return
  }
  func.func @transform_0(%arg0: i32) -> (i32, i32) {
    %c0_i32 = arith.constant 0 : i32
    %c0_i32_0 = arith.constant 0 : i32
    return %arg0, %c0_i32 : i32, i32
  }
  func.func @transform_1(%arg0: i32) -> (i32, i32) {
    %c0_i32 = arith.constant 0 : i32
    %c0_i32_0 = arith.constant 0 : i32
    %c0_i32_1 = arith.constant 0 : i32
    return %c0_i32, %c0_i32_0 : i32, i32
  }
  func.func @transform_2(%arg0: i32) -> (i32, i32) {
    %c0_i32 = arith.constant 0 : i32
    %c0_i32_0 = arith.constant 0 : i32
    return %arg0, %c0_i32 : i32, i32
  }
}

</mosaic_0001>

<llo_original>
// kernel: _forward_padded.1
$region0: #{_forward_padded.1}
  #allocation0 [shape = 'u32[]', space=smem, size = 0x4, offset = 0x4, fixed_abs, tag = 'smem constant byte address 0x4 - core index']
  #allocation1 [shape = 'u32[144,128]{1,0:T(1,128)}', space=vmem, size = 0x12000, scoped, tag = 'internal scratch']
  %s0 = inlined_call_operand.vmem [shape: f32[8,128], index: 0, kind: input, shape index: {}]
  %s1 = inlined_call_operand.hbm [shape: f32[280,128], index: 1, kind: input, shape index: {}]
  %s2 = inlined_call_operand.vmem [shape: f32[8,1], index: 2, kind: output, shape index: {}]
  %s3 = sld [smem:[#allocation0]]
  $region22: #{_forward_padded.1} parent=0
    _
  %s5 = ssub.s32 1, %s3
  %s6 = scalar_select 0, %s5, %s3
  $region1: #{_forward_padded.1} parent=0
    #allocation2 [shape = 'u8[143360]{0}', space=vmem, size = 0x23000, scoped, tag = 'input window, operand 1, single buffered']
    #allocation3 [shape = 's32[1]{0}', space=sflag, size = 0x4, scoped, tag = 'scoped memory for _forward_padded.1']
    %7 = vsyncpa [#allocation3], 0
    // Predicated region
    $region2: #{_forward_padded.1} parent=1 // pred_check
      _
    $region3: #{_forward_padded.1} parent=1 // pred_check_branch
      %9 = sbr.rel (0) target = $region5
    $region4: #{_forward_padded.1} parent=1 // pred_region
      _
    $region5: #{_forward_padded.1} parent=1 // pred_fallthru
      _
    // Predicated region
    $region6: #{_forward_padded.1} parent=1 // pred_check
      _
    $region7: #{_forward_padded.1} parent=1 // pred_check_branch
      %11 = sbr.rel (0) target = $region9
    $region8: #{_forward_padded.1} parent=1 // pred_region
      %s13 = ssub.s32 4480, 4480
      %14 = vsyncadd [#allocation3], %s13
      %s15 = sshll.u32 [#allocation2], 4
      %s16 = int_to_ptr.vmem [resolvable:$true] %s15
      %21 = dma.hbm_to_vmem [thread:$0]  %s1, 4480, %s16, [#allocation3], 128, 128, 8
    $region9: #{_forward_padded.1} parent=1 // pred_fallthru
      _
    // Predicated region
    $region10: #{_forward_padded.1} parent=1 // pred_check
      _
    $region11: #{_forward_padded.1} parent=1 // pred_check_branch
      %23 = sbr.rel (0) target = $region13
    $region12: #{_forward_padded.1} parent=1 // pred_region
      %24 = dma.done [#allocation3], 4480
    $region13: #{_forward_padded.1} parent=1 // pred_fallthru
      _
    %v25 = vld [vmem:[%s0] sm:$0xff]
    %v26 = vld [vmem:[#allocation2] sm:$0xff]
    %v27 = vld [vmem:[#allocation2 + $0x8] sm:$0xff]
    %v28 = vld [vmem:[#allocation2 + $0x10] sm:$0xff]
    %v29 = vld [vmem:[#allocation2 + $0x18] sm:$0xff]
    %v30 = vld [vmem:[#allocation2 + $0x20] sm:$0xff]
    %v31 = vld [vmem:[#allocation2 + $0x28] sm:$0xff]
    %v32 = vld [vmem:[#allocation2 + $0x30] sm:$0xff]
    %v33 = vld [vmem:[#allocation2 + $0x38] sm:$0xff]
    %v34 = vld [vmem:[#allocation2 + $0x40] sm:$0xff]
    %v35 = vld [vmem:[#allocation2 + $0x48] sm:$0xff]
    %v36 = vld [vmem:[#allocation2 + $0x50] sm:$0xff]
    %v37 = vld [vmem:[#allocation2 + $0x58] sm:$0xff]
    %v38 = vld [vmem:[#allocation2 + $0x60] sm:$0xff]
    %v39 = vld [vmem:[#allocation2 + $0x68] sm:$0xff]
    %v40 = vld [vmem:[#allocation2 + $0x70] sm:$0xff]
    %v41 = vld [vmem:[#allocation2 + $0x78] sm:$0xff]
    %v42 = vld [vmem:[#allocation2 + $0x80] sm:$0x1]
    %v43 = vlaneseq
    %v44 = vshrl.u32 %v43, 7
    %v45 = vsub.s32 0, %v44
    %v46 = vrot.slane %v42, %v45
    %47 = vmatprep.subr.mxu0 0.0
    %48 = vmatpush1.msra.mxu0 %v26
    %49 = vmatprep.subr.mxu0 0.0
    %50 = vmatpush1.msra.mxu0 %v27
    %51 = vmatprep.subr.mxu0 0.0
    %52 = vmatpush1.msra.mxu0 %v28
    %53 = vmatprep.subr.mxu0 0.0
    %54 = vmatpush1.msra.mxu0 %v29
    %55 = vmatprep.subr.mxu0 0.0
    %56 = vmatpush1.msra.mxu0 %v30
    %57 = vmatprep.subr.mxu0 0.0
    %58 = vmatpush1.msra.mxu0 %v31
    %59 = vmatprep.subr.mxu0 0.0
    %60 = vmatpush1.msra.mxu0 %v32
    %61 = vmatprep.subr.mxu0 0.0
    %62 = vmatpush1.msra.mxu0 %v33
    %63 = vmatprep.subr.mxu0 0.0
    %64 = vmatpush1.msra.mxu0 %v34
    %65 = vmatprep.subr.mxu0 0.0
    %66 = vmatpush1.msra.mxu0 %v35
    %67 = vmatprep.subr.mxu0 0.0
    %68 = vmatpush1.msra.mxu0 %v36
    %69 = vmatprep.subr.mxu0 0.0
    %70 = vmatpush1.msra.mxu0 %v37
    %71 = vmatprep.subr.mxu0 0.0
    %72 = vmatpush1.msra.mxu0 %v38
    %73 = vmatprep.subr.mxu0 0.0
    %74 = vmatpush1.msra.mxu0 %v39
    %75 = vmatprep.subr.mxu0 0.0
    %76 = vmatpush1.msra.mxu0 %v40
    %77 = vmatprep.subr.mxu0 0.0
    %78 = vmatpush1.msra.mxu0 %v41
    %79 = vmatprep.subr.mxu0 0.0
    %80 = vmatpush1.msra.mxu0 0.0
    %81 = vmatprep.subr.mxu0 0.0
    %82 = vmatpush1.msra.mxu0 0.0
    %83 = vmatprep.subr.mxu0 0.0
    %84 = vmatpush1.msra.mxu0 0.0
    %85 = vmatprep.subr.mxu0 0.0
    %86 = vmatpush1.msra.mxu0 0.0
    %87 = vmatprep.subr.mxu0 0.0
    %88 = vmatpush1.msra.mxu0 0.0
    %89 = vmatprep.subr.mxu0 0.0
    %90 = vmatpush1.msra.mxu0 0.0
    %91 = vmatprep.subr.mxu0 0.0
    %92 = vmatpush1.msra.mxu0 0.0
    %93 = vmatprep.subr.mxu0 0.0
    %94 = vmatpush1.msra.mxu0 0.0
    %95 = vmatprep.subr.mxu0 0.0
    %96 = vmatpush1.msra.mxu0 0.0
    %97 = vmatprep.subr.mxu0 0.0
    %98 = vmatpush1.msra.mxu0 0.0
    %99 = vmatprep.subr.mxu0 0.0
    %100 = vmatpush1.msra.mxu0 0.0
    %101 = vmatprep.subr.mxu0 0.0
    %102 = vmatpush1.msra.mxu0 0.0
    %103 = vmatprep.subr.mxu0 0.0
    %104 = vmatpush1.msra.mxu0 0.0
    %105 = vmatprep.subr.mxu0 0.0
    %106 = vmatpush1.msra.mxu0 0.0
    %107 = vmatprep.subr.mxu0 0.0
    %108 = vmatpush1.msra.mxu0 0.0
    %109 = vmatprep.subr.mxu0 0.0
    %110 = vmatpush1.msra.mxu0 0.0
    %111 = vmatprep.mubr.f32.mxu0 0.0
    %112 = vmatmul.mubr.f32.gmra.mrb[0].mxu0 %v25
    %v113 = vpop.f32.mrb[0].mxu0
    %v114 = vadd.f32 %v46, %v113
    %v115 = vpop.f32.mrb[0].mxu0
    %116 = vdwg.mxu0
    %v117 = vmax.f32 %v114, 0.0
    %v118 = vld [vmem:[#allocation2 + $0x88] sm:$0xff]
    %v119 = vld [vmem:[#allocation2 + $0x90] sm:$0xff]
    %v120 = vld [vmem:[#allocation2 + $0x98] sm:$0xff]
    %v121 = vld [vmem:[#allocation2 + $0xa0] sm:$0xff]
    %v122 = vld [vmem:[#allocation2 + $0xa8] sm:$0xff]
    %v123 = vld [vmem:[#allocation2 + $0xb0] sm:$0xff]
    %v124 = vld [vmem:[#allocation2 + $0xb8] sm:$0xff]
    %v125 = vld [vmem:[#allocation2 + $0xc0] sm:$0xff]
    %v126 = vld [vmem:[#allocation2 + $0xc8] sm:$0xff]
    %v127 = vld [vmem:[#allocation2 + $0xd0] sm:$0xff]
    %v128 = vld [vmem:[#allocation2 + $0xd8] sm:$0xff]
    %v129 = vld [vmem:[#allocation2 + $0xe0] sm:$0xff]
    %v130 = vld [vmem:[#allocation2 + $0xe8] sm:$0xff]
    %v131 = vld [vmem:[#allocation2 + $0xf0] sm:$0xff]
    %v132 = vld [vmem:[#allocation2 + $0xf8] sm:$0xff]
    %v133 = vld [vmem:[#allocation2 + $0x100] sm:$0xff]
    %v134 = vld [vmem:[#allocation2 + $0x108] sm:$0x1]
    %v135 = vlaneseq
    %v136 = vshrl.u32 %v135, 7
    %v137 = vsub.s32 0, %v136
    %v138 = vrot.slane %v134, %v137
    %139 = vmatprep.subr.mxu0 0.0
    %140 = vmatpush1.msra.mxu0 %v118
    %141 = vmatprep.subr.mxu0 0.0
    %142 = vmatpush1.msra.mxu0 %v119
    %143 = vmatprep.subr.mxu0 0.0
    %144 = vmatpush1.msra.mxu0 %v120
    %145 = vmatprep.subr.mxu0 0.0
    %146 = vmatpush1.msra.mxu0 %v121
    %147 = vmatprep.subr.mxu0 0.0
    %148 = vmatpush1.msra.mxu0 %v122
    %149 = vmatprep.subr.mxu0 0.0
    %150 = vmatpush1.msra.mxu0 %v123
    %151 = vmatprep.subr.mxu0 0.0
    %152 = vmatpush1.msra.mxu0 %v124
    %153 = vmatprep.subr.mxu0 0.0
    %154 = vmatpush1.msra.mxu0 %v125
    %155 = vmatprep.subr.mxu0 0.0
    %156 = vmatpush1.msra.mxu0 %v126
    %157 = vmatprep.subr.mxu0 0.0
    %158 = vmatpush1.msra.mxu0 %v127
    %159 = vmatprep.subr.mxu0 0.0
    %160 = vmatpush1.msra.mxu0 %v128
    %161 = vmatprep.subr.mxu0 0.0
    %162 = vmatpush1.msra.mxu0 %v129
    %163 = vmatprep.subr.mxu0 0.0
    %164 = vmatpush1.msra.mxu0 %v130
    %165 = vmatprep.subr.mxu0 0.0
    %166 = vmatpush1.msra.mxu0 %v131
    %167 = vmatprep.subr.mxu0 0.0
    %168 = vmatpush1.msra.mxu0 %v132
    %169 = vmatprep.subr.mxu0 0.0
    %170 = vmatpush1.msra.mxu0 %v133
    %171 = vmatprep.subr.mxu0 0.0
    %172 = vmatpush1.msra.mxu0 0.0
    %173 = vmatprep.subr.mxu0 0.0
    %174 = vmatpush1.msra.mxu0 0.0
    %175 = vmatprep.subr.mxu0 0.0
    %176 = vmatpush1.msra.mxu0 0.0
    %177 = vmatprep.subr.mxu0 0.0
    %178 = vmatpush1.msra.mxu0 0.0
    %179 = vmatprep.subr.mxu0 0.0
    %180 = vmatpush1.msra.mxu0 0.0
    %181 = vmatprep.subr.mxu0 0.0
    %182 = vmatpush1.msra.mxu0 0.0
    %183 = vmatprep.subr.mxu0 0.0
    %184 = vmatpush1.msra.mxu0 0.0
    %185 = vmatprep.subr.mxu0 0.0
    %186 = vmatpush1.msra.mxu0 0.0
    %187 = vmatprep.subr.mxu0 0.0
    %188 = vmatpush1.msra.mxu0 0.0
    %189 = vmatprep.subr.mxu0 0.0
    %190 = vmatpush1.msra.mxu0 0.0
    %191 = vmatprep.subr.mxu0 0.0
    %192 = vmatpush1.msra.mxu0 0.0
    %193 = vmatprep.subr.mxu0 0.0
    %194 = vmatpush1.msra.mxu0 0.0
    %195 = vmatprep.subr.mxu0 0.0
    %196 = vmatpush1.msra.mxu0 0.0
    %197 = vmatprep.subr.mxu0 0.0
    %198 = vmatpush1.msra.mxu0 0.0
    %199 = vmatprep.subr.mxu0 0.0
    %200 = vmatpush1.msra.mxu0 0.0
    %201 = vmatprep.subr.mxu0 0.0
    %202 = vmatpush1.msra.mxu0 0.0
    %203 = vmatprep.mubr.f32.mxu0 0.0
    %204 = vmatmul.mubr.f32.gmra.mrb[0].mxu0 %v117
    %v205 = vpop.f32.mrb[0].mxu0
    %v206 = vadd.f32 %v138, %v205
    %v207 = vpop.f32.mrb[0].mxu0
    %208 = vdwg.mxu0
    %v209 = vmax.f32 %v206, 0.0
    %v210 = vld [vmem:[#allocation2 + $0x110] sm:$0x1]
    %v211 = vld [vmem:[#allocation2 + $0x111] sm:$0x1]
    %v212 = vlaneseq
    %v213 = vshrl.u32 %v212, 7
    %v214 = vsub.s32 0, %v213
    %v215 = vrot.slane %v210, %v214
    %v216 = vmul.f32 %v209, %v215
    %217 = vadd.xlane.f32.xlu0 %v216
    %v218 = vpop.xlane.xlu0 %217
    %v219 = vlaneseq
    %v220 = vshrl.u32 %v219, 7
    %v221 = vsub.s32 0, %v220
    %v222 = vrot.slane %v211, %v221
    %v223 = vadd.f32 %v218, %v222
    %vm224 = vcmask 7168
    %225 = vst.msk [vmem:[%s2] sm:$0xff] %vm224, %v223
    // Predicated region
    $region14: #{_forward_padded.1} parent=1 // pred_check
      _
    $region15: #{_forward_padded.1} parent=1 // pred_check_branch
      %227 = sbr.rel (0) target = $region17
    $region16: #{_forward_padded.1} parent=1 // pred_region
      _
    $region17: #{_forward_padded.1} parent=1 // pred_fallthru
      _
    // Predicated region
    $region18: #{_forward_padded.1} parent=1 // pred_check
      _
    $region19: #{_forward_padded.1} parent=1 // pred_check_branch
      %229 = sbr.rel (0) target = $region21
    $region20: #{_forward_padded.1} parent=1 // pred_region
      _
    $region21: #{_forward_padded.1} parent=1 // pred_fallthru
      _
    %230 = vsyncpa [#allocation3], 1

</llo_original>
